<compile_context>
chip_gen: v7x
topology: tpu7x:2x2x1
jax: 0.10.0
libtpu: 0.0.40
codegen_flags: <defaults>
</compile_context>

<pallas_src>
import functools
import math

import jax
import jax.numpy as jnp
from jax import lax
from jax.experimental import pallas as pl
from jax.experimental.pallas import tpu as pltpu

_LN20 = float(math.log(20.0))


def _multi_attention_kernel(x_ref, w_ref, b_ref, agg_ref, wout_ref, *,
                            d_val, seq_len, tile_t, needs_mask):
    t = pl.program_id(1)

    # Zero the per-batch aggregation accumulator on the first sequence tile.
    @pl.when(t == 0)
    def _():
        agg_ref[...] = jnp.zeros_like(agg_ref)

    x = x_ref[0]                                                # [TT, d_in]

    # Single fused projection: [TT, d_in] @ [d_in, d_val + nheads] + bias.
    # Columns [0:d_val] are the value projection; columns [d_val:] are the
    # similarity (key projection with the query already folded in).
    proj = jnp.dot(x, w_ref[...],
                   preferred_element_type=jnp.float32) + b_ref[...]

    if needs_mask:
        # Only emitted when T % tile_t != 0.  Masking `proj` (a select, not a
        # multiply) zeroes BOTH vals and sim for out-of-range rows, so stale
        # VMEM (even NaN/Inf) cannot poison the aggregation accumulator.
        row = t * tile_t + lax.broadcasted_iota(jnp.int32, (tile_t, 1), 0)
        proj = jnp.where(row < seq_len, proj, 0.0)

    vals = proj[:, :d_val]                                      # [TT, d_val]
    sim = proj[:, d_val:]                                       # [TT, nheads]

    # logistic(sim) = 1/(1 + 20*e^{-sim}) == 0.5*tanh(0.5*(sim - ln20)) + 0.5
    # (exact identity; tanh runs on the EUP, no VPU divide).
    w = 0.5 * jnp.tanh(0.5 * (sim - _LN20)) + 0.5

    wout_ref[0] = w.astype(wout_ref.dtype)

    # aggregations[b] += value^T @ weights     -> [d_val, nheads]
    agg_ref[0] = agg_ref[0] + lax.dot_general(
        vals, w, (((0,), (0,)), ((), ())),
        preferred_element_type=jnp.float32)


def multi_attention(embeds, wk, bk, wv, bv, query, *, max_tile_t=4096):
    """Pallas forward of multi_attention (return_weights=True).

    embeds: [B, T, input_dim] f32
    wk: [key_dim, input_dim], bk: [key_dim]     (PyTorch nn.Linear layout)
    wv: [value_dim, input_dim], bv: [value_dim]
    query: [key_dim, nheads]
    Returns (aggregations [B, value_dim, nheads], weights [B, T, nheads]).
    """
    B, T, d_in = embeds.shape
    d_val = wv.shape[0]
    nheads = query.shape[1]
    d_out = d_val + nheads

    # Fold query into the key projection and fuse with the value projection:
    #   proj = x @ [Wv^T | Wk^T @ query] + [bv | bk @ query]
    w_fused = jnp.concatenate([wv.T, wk.T @ query], axis=1)      # [d_in, d_out]
    b_fused = jnp.concatenate([bv, bk @ query]).reshape(1, d_out)

    # Sequence tile: full T if it fits, else a large multiple-of-128 tile so
    # the (8,128) constraint holds and per-step overhead is amortized.
    cap = max(128, (max_tile_t // 128) * 128)
    tt = T if T <= cap else cap
    grid = (B, pl.cdiv(T, tt))
    needs_mask = (T % tt) != 0

    kernel = functools.partial(_multi_attention_kernel, d_val=d_val,
                               seq_len=T, tile_t=tt, needs_mask=needs_mask)

    flops = 2 * B * T * (d_in * d_out + d_val * nheads)
    bytes_accessed = 4 * (embeds.size + w_fused.size + b_fused.size
                          + B * d_val * nheads + B * T * nheads)

    agg, weights = pl.pallas_call(
        kernel,
        out_shape=(
            jax.ShapeDtypeStruct((B, d_val, nheads), jnp.float32),
            jax.ShapeDtypeStruct((B, T, nheads), jnp.float32),
        ),
        grid_spec=pltpu.PrefetchScalarGridSpec(
            num_scalar_prefetch=0,
            grid=grid,
            in_specs=[
                # activations: tiled over (batch, seq tile)
                pl.BlockSpec((1, tt, d_in), lambda b, t: (b, t, 0)),
                # fused projection weight / bias: resident in VMEM
                pl.BlockSpec((d_in, d_out), lambda b, t: (0, 0)),
                pl.BlockSpec((1, d_out), lambda b, t: (0, 0)),
            ],
            out_specs=[
                # aggregation accumulator: same block across the seq axis
                pl.BlockSpec((1, d_val, nheads), lambda b, t: (b, 0, 0)),
                # attention weights: one tile per (batch, seq tile)
                pl.BlockSpec((1, tt, nheads), lambda b, t: (b, t, 0)),
            ],
        ),
        compiler_params=pltpu.CompilerParams(
            dimension_semantics=("parallel", "arbitrary"),
            vmem_limit_bytes=32 * 1024 * 1024,
        ),
        cost_estimate=pl.CostEstimate(
            flops=flops,
            transcendentals=B * T * nheads,
            bytes_accessed=bytes_accessed,
        ),
    )(embeds, w_fused, b_fused)
    return agg, weights


if __name__ == "__main__":
    # Module defaults: input_dim=100, key_dim=50, value_dim=50, nheads=10.
    input_dim, key_dim, value_dim, nheads = 100, 50, 50, 10
    B, T = 2, 8

    key = jax.random.PRNGKey(0)
    kx, kwk, kbk, kwv, kbv, kq = jax.random.split(key, 6)

    embeds = jax.random.normal(kx, (B, T, input_dim), dtype=jnp.float32)

    # nn.Linear-style uniform init in [-1/sqrt(fan_in), 1/sqrt(fan_in)].
    bnd = 1.0 / math.sqrt(input_dim)
    wk = jax.random.uniform(kwk, (key_dim, input_dim), jnp.float32, -bnd, bnd)
    bk = jax.random.uniform(kbk, (key_dim,), jnp.float32, -bnd, bnd)
    wv = jax.random.uniform(kwv, (value_dim, input_dim), jnp.float32, -bnd, bnd)
    bv = jax.random.uniform(kbv, (value_dim,), jnp.float32, -bnd, bnd)
    # kaiming_uniform_(a=sqrt(5)) on (key_dim, nheads) ~ U(-1/sqrt(nheads), ...)
    qb = 1.0 / math.sqrt(nheads)
    query = jax.random.uniform(kq, (key_dim, nheads), jnp.float32, -qb, qb)

    agg, weights = multi_attention(embeds, wk, bk, wv, bv, query)
    agg = jax.block_until_ready(agg)
    weights = jax.block_until_ready(weights)

    # Pure-JAX reference (original, unfused formulation).
    keys_ref = jnp.einsum("btj,kj->btk", embeds, wk) + bk
    vals_ref = jnp.einsum("btj,vj->btv", embeds, wv) + bv
    sim_ref = jnp.einsum("btk,kh->bth", keys_ref, query)
    w_ref = 1.0 / (1.0 + 20.0 * jnp.exp(-sim_ref))
    agg_ref = jnp.einsum("btv,bth->bvh", vals_ref, w_ref)

    assert agg.shape == (B, value_dim, nheads)
    assert weights.shape == (B, T, nheads)
    # Tolerances account for the (mathematically exact) query-fold /
    # fused-projection re-association and EUP tanh vs exp rounding.
    assert jnp.allclose(weights, w_ref, atol=1e-4, rtol=1e-4)
    assert jnp.allclose(agg, agg_ref, atol=1e-3, rtol=1e-3)

    print("KERNEL_OK")
</pallas_src>

<mosaic_0001>
module attributes {stable_mosaic.version = 11 : i64} {
  func.func @_multi_attention_kernel(%arg0: i32, %arg1: i32, %arg2: memref<1x8x100xf32, #tpu.memory_space<vmem>>, %arg3: memref<100x60xf32, #tpu.memory_space<vmem>>, %arg4: memref<1x60xf32, #tpu.memory_space<vmem>>, %arg5: memref<1x50x10xf32, #tpu.memory_space<vmem>>, %arg6: memref<1x8x10xf32, #tpu.memory_space<vmem>>) attributes {dimension_semantics = [#tpu.dimension_semantics<parallel>, #tpu.dimension_semantics<arbitrary>], iteration_bounds = array<i64: 2, 1>, scalar_prefetch = 0 : i64, scratch_operands = 0 : i64, tpu.core_type = #tpu.core_type<tc>, window_params = [{transform_indices = @transform_0, window_bounds = array<i64: 1, 8, 100>}, {pipeline_mode = #tpu.pipeline_mode<synchronous>, transform_indices = @transform_1, window_bounds = array<i64: 100, 60>}, {pipeline_mode = #tpu.pipeline_mode<synchronous>, transform_indices = @transform_2, window_bounds = array<i64: 1, 60>}, {transform_indices = @transform_3, window_bounds = array<i64: 1, 50, 10>}, {transform_indices = @transform_4, window_bounds = array<i64: 1, 8, 10>}]} {
    %c0_i32 = arith.constant 0 : i32
    %0 = arith.cmpi eq, %arg1, %c0_i32 : i32
    %1 = arith.extui %0 : i1 to i32
    %c0_i32_0 = arith.constant 0 : i32
    %2 = arith.cmpi ne, %1, %c0_i32_0 : i32
    scf.if %2 {
      %cst_21 = arith.constant 0.000000e+00 : f32
      %31 = vector.broadcast %cst_21 : f32 to vector<1x50x10xf32>
      %c0_22 = arith.constant 0 : index
      %c0_23 = arith.constant 0 : index
      %c0_24 = arith.constant 0 : index
      %32 = vector.load %arg5[%c0_22, %c0_23, %c0_24] : memref<1x50x10xf32, #tpu.memory_space<vmem>>, vector<1x50x10xf32>
      tpu.vector_store %arg5[%c0_22, %c0_23, %c0_24], %31 {strides = array<i32>} : memref<1x50x10xf32, #tpu.memory_space<vmem>>, vector<1x50x10xf32>,
    } else {
    }
    %c0 = arith.constant 0 : index
    %c0_1 = arith.constant 0 : index
    %c0_2 = arith.constant 0 : index
    %3 = vector.load %arg2[%c0, %c0_1, %c0_2] : memref<1x8x100xf32, #tpu.memory_space<vmem>>, vector<1x8x100xf32>
    %4 = vector.shape_cast %3 : vector<1x8x100xf32> to vector<8x100xf32>
    %c0_3 = arith.constant 0 : index
    %c0_4 = arith.constant 0 : index
    %5 = vector.load %arg3[%c0_3, %c0_4] : memref<100x60xf32, #tpu.memory_space<vmem>>, vector<100x60xf32>
    %cst = arith.constant dense<0.000000e+00> : vector<8x60xf32>
    %6 = tpu.matmul %4, %5, %cst {dimension_numbers = #tpu.dot_dimension_numbers<[1], [0], [0], [1], [0, 0, 1, 1], [], []>} : vector<8x100xf32>, vector<100x60xf32>, vector<8x60xf32> -> vector<8x60xf32>
    %c0_5 = arith.constant 0 : index
    %c0_6 = arith.constant 0 : index
    %7 = vector.load %arg4[%c0_5, %c0_6] : memref<1x60xf32, #tpu.memory_space<vmem>>, vector<1x60xf32>
    %8 = vector.broadcast %7 : vector<1x60xf32> to vector<8x60xf32>
    %9 = arith.addf %6, %8 : vector<8x60xf32>
    %10 = vector.extract_strided_slice %9 {offsets = [0, 0], sizes = [8, 50], strides = [1, 1]} : vector<8x60xf32> to vector<8x50xf32>
    %11 = vector.extract_strided_slice %9 {offsets = [0, 50], sizes = [8, 10], strides = [1, 1]} : vector<8x60xf32> to vector<8x10xf32>
    %cst_7 = arith.constant 2.99573231 : f32
    %12 = vector.broadcast %cst_7 : f32 to vector<8x10xf32>
    %13 = arith.subf %11, %12 : vector<8x10xf32>
    %cst_8 = arith.constant 5.000000e-01 : f32
    %14 = vector.broadcast %cst_8 : f32 to vector<8x10xf32>
    %15 = arith.mulf %14, %13 : vector<8x10xf32>
    %16 = math.tanh %15 : vector<8x10xf32>
    %cst_9 = arith.constant 5.000000e-01 : f32
    %17 = vector.broadcast %cst_9 : f32 to vector<8x10xf32>
    %18 = arith.mulf %17, %16 : vector<8x10xf32>
    %cst_10 = arith.constant 5.000000e-01 : f32
    %19 = vector.broadcast %cst_10 : f32 to vector<8x10xf32>
    %20 = arith.addf %18, %19 : vector<8x10xf32>
    %c0_11 = arith.constant 0 : index
    %c0_12 = arith.constant 0 : index
    %c0_13 = arith.constant 0 : index
    %21 = vector.load %arg6[%c0_11, %c0_12, %c0_13] : memref<1x8x10xf32, #tpu.memory_space<vmem>>, vector<1x8x10xf32>
    %22 = vector.shape_cast %21 : vector<1x8x10xf32> to vector<8x10xf32>
    %23 = vector.shape_cast %20 : vector<8x10xf32> to vector<1x8x10xf32>
    tpu.vector_store %arg6[%c0_11, %c0_12, %c0_13], %23 {strides = array<i32>} : memref<1x8x10xf32, #tpu.memory_space<vmem>>, vector<1x8x10xf32>,
    %c0_14 = arith.constant 0 : index
    %c0_15 = arith.constant 0 : index
    %c0_16 = arith.constant 0 : index
    %24 = vector.load %arg5[%c0_14, %c0_15, %c0_16] : memref<1x50x10xf32, #tpu.memory_space<vmem>>, vector<1x50x10xf32>
    %25 = vector.shape_cast %24 : vector<1x50x10xf32> to vector<50x10xf32>
    %cst_17 = arith.constant dense<0.000000e+00> : vector<50x10xf32>
    %26 = tpu.matmul %10, %20, %cst_17 {dimension_numbers = #tpu.dot_dimension_numbers<[0], [0], [1], [1], [0, 1, 1, 1], [], []>} : vector<8x50xf32>, vector<8x10xf32>, vector<50x10xf32> -> vector<50x10xf32>
    %27 = arith.addf %25, %26 : vector<50x10xf32>
    %c0_18 = arith.constant 0 : index
    %c0_19 = arith.constant 0 : index
    %c0_20 = arith.constant 0 : index
    %28 = vector.load %arg5[%c0_18, %c0_19, %c0_20] : memref<1x50x10xf32, #tpu.memory_space<vmem>>, vector<1x50x10xf32>
    %29 = vector.shape_cast %28 : vector<1x50x10xf32> to vector<50x10xf32>
    %30 = vector.shape_cast %27 : vector<50x10xf32> to vector<1x50x10xf32>
    tpu.vector_store %arg5[%c0_18, %c0_19, %c0_20], %30 {strides = array<i32>} : memref<1x50x10xf32, #tpu.memory_space<vmem>>, vector<1x50x10xf32>,
    return
  }
  func.func @transform_0(%arg0: i32, %arg1: i32) -> (i32, i32, i32) {
    %c0_i32 = arith.constant 0 : i32
    %c0_i32_0 = arith.constant 0 : i32
    return %arg0, %arg1, %c0_i32 : i32, i32, i32
  }
  func.func @transform_1(%arg0: i32, %arg1: i32) -> (i32, i32) {
    %c0_i32 = arith.constant 0 : i32
    %c0_i32_0 = arith.constant 0 : i32
    %c0_i32_1 = arith.constant 0 : i32
    return %c0_i32, %c0_i32_0 : i32, i32
  }
  func.func @transform_2(%arg0: i32, %arg1: i32) -> (i32, i32) {
    %c0_i32 = arith.constant 0 : i32
    %c0_i32_0 = arith.constant 0 : i32
    %c0_i32_1 = arith.constant 0 : i32
    return %c0_i32, %c0_i32_0 : i32, i32
  }
  func.func @transform_3(%arg0: i32, %arg1: i32) -> (i32, i32, i32) {
    %c0_i32 = arith.constant 0 : i32
    %c0_i32_0 = arith.constant 0 : i32
    %c0_i32_1 = arith.constant 0 : i32
    return %arg0, %c0_i32, %c0_i32_0 : i32, i32, i32
  }
  func.func @transform_4(%arg0: i32, %arg1: i32) -> (i32, i32, i32) {
    %c0_i32 = arith.constant 0 : i32
    %c0_i32_0 = arith.constant 0 : i32
    return %arg0, %arg1, %c0_i32 : i32, i32, i32
  }
}

</mosaic_0001>

<llo_original>
// kernel: tpu_custom_call.1
$region0: #{tpu_custom_call.1}
  #allocation0 [shape = 'u32[]', space=smem, size = 0x4, offset = 0x4, fixed_abs, tag = 'smem constant byte address 0x4 - core index']
  #allocation1 [shape = 'u32[144,128]{1,0:T(1,128)}', space=vmem, size = 0x12000, scoped, tag = 'internal scratch']
  %s0 = inlined_call_operand.vmem [shape: f32[2,8,100], index: 0, kind: input, shape index: {}]
  %s1 = inlined_call_operand.vmem [shape: f32[100,60], index: 1, kind: input, shape index: {}]
  %s2 = inlined_call_operand.vmem [shape: f32[1,60], index: 2, kind: input, shape index: {}]
  %s3 = inlined_call_operand.vmem [shape: f32[2,50,10], index: 3, kind: output, shape index: {0}]
  %s4 = inlined_call_operand.hbm [shape: f32[2,8,10], index: 4, kind: output, shape index: {1}]
  %5 = xla_tuple %s3, %s4
  %s6 = sld [smem:[#allocation0]]
  $region57: #{tpu_custom_call.1} parent=0
    _
  %s8 = ssub.s32 1, %s6
  %s9 = scalar_select 0, %s8, %s6
  $region1: #{tpu_custom_call.1} parent=0
    #allocation2 [shape = 'u8[8192]{0}', space=vmem, size = 0x2000, scoped, tag = 'output window, operand 1']
    #allocation3 [shape = 's32[2]{0}', space=sflag, size = 0x8, scoped, tag = 'scoped memory for tpu_custom_call.1']
    %10 = vsyncpa [#allocation3], 0
    %s11 = scalar_lea.sflag [#allocation3], 1
    %12 = vsyncpa %s11, 0
    loop: start=0, step=1, limit=4
    $region2: #{tpu_custom_call.1} parent=1 // loop_pre_header
      _
    $region3: #{tpu_custom_call.1} parent=1 // loop_header
      %s14 = sphi 0, %s18
      %p15 = scmp.ge.s32.totalorder %s14, 4
      %s21 = sphi 0, %s33
      %s22 = sphi 0, %s29
      %s23 = sphi 0, %s21
      %s24 = sphi 0, %s22
      %s25 = sphi 0, %s23
      %s26 = sphi 0, %s24
      %s38 = sphi 0, %s40
      %s41 = sphi 0, %s38
      %s42 = sphi 0, %s41
      %s58 = sphi 0, %s42
      %s62 = sphi 0, %s62
      %s64 = sphi 0, %s62
      %s65 = sphi 0, %s64
      %s79 = sphi 0, %s65
      %s83 = sphi 0, %s83
      %s85 = sphi 0, %s83
      %s86 = sphi 0, %s85
      %s100 = sphi 0, %s86
      %s106 = sphi 0, %s108
      %s109 = sphi 0, %s106
      %s110 = sphi 0, %s109
      %s126 = sphi 0, %s110
      %s134 = sphi 0, %s136
      %s137 = sphi 0, %s134
      %s138 = sphi 0, %s137
      %s154 = sphi 0, %s138
    $region4: #{tpu_custom_call.1} parent=1 // loop_header_branch
      %17 = sbr.rel (%p15) target = $region8
    $region5: #{tpu_custom_call.1} parent=1 // loop_body
      %s19 = ssub.s32 %s14, 1
      %s20 = ssub.s32 %s14, 2
      %s27 = sadd.s32 1, %s22
      %p28 = scmp.ge.s32.totalorder %s27, 1
      %s29 = scalar_select %p28, 0, %s27
      %s30 = sadd.s32 1, %s21
      %s31 = scalar_select %p28, %s30, %s21
      %p32 = scmp.ge.s32.totalorder %s31, 2
      %s33 = scalar_select %p32, 0, %s31
      %s34 = ssub.s32 %s21, %s33
      %s35 = ssub.s32 %s22, %s29
      %s36 = sor.u32 %s34, %s35
      %p37 = scmp.eq.s32.totalorder %s36, 0
      %s39 = sadd.s32 %s38, 1
      %s40 = scalar_select %p37, %s38, %s39
      %p43 = pneg %p37
      %p44 = scmp.eq.s32.totalorder %s14, 1
      %p45 = por %p43, %p44
      %p46 = scmp.ne.s32.totalorder %s38, %s41
      %p47 = scmp.eq.s32.totalorder %s14, 0
      %p48 = por %p46, %p47
      %p49 = scmp.ne.s32.totalorder %s38, %s41
      %p50 = scmp.eq.s32.totalorder %s19, 1
      %p51 = por %p49, %p50
      %p52 = scmp.ne.s32.totalorder %s41, %s42
      %p53 = scmp.eq.s32.totalorder %s19, 0
      %p54 = por %p52, %p53
      %p55 = scmp.ne.s32.totalorder %s41, %s42
      %p56 = scmp.eq.s32.totalorder %s20, 1
      %p57 = por %p55, %p56
      %p59 = scmp.ne.s32.totalorder %s42, %s58
      %p60 = scmp.eq.s32.totalorder %s20, 0
      %p61 = por %p59, %p60
      %s63 = sadd.s32 %s62, 1
      %p66 = scmp.eq.s32.totalorder %s14, 1
      %p67 = scmp.ne.s32.totalorder %s62, %s64
      %p68 = scmp.eq.s32.totalorder %s14, 0
      %p69 = por %p67, %p68
      %p70 = scmp.ne.s32.totalorder %s62, %s64
      %p71 = scmp.eq.s32.totalorder %s19, 1
      %p72 = por %p70, %p71
      %p73 = scmp.ne.s32.totalorder %s64, %s65
      %p74 = scmp.eq.s32.totalorder %s19, 0
      %p75 = por %p73, %p74
      %p76 = scmp.ne.s32.totalorder %s64, %s65
      %p77 = scmp.eq.s32.totalorder %s20, 1
      %p78 = por %p76, %p77
      %p80 = scmp.ne.s32.totalorder %s65, %s79
      %p81 = scmp.eq.s32.totalorder %s20, 0
      %p82 = por %p80, %p81
      %s84 = sadd.s32 %s83, 1
      %p87 = scmp.eq.s32.totalorder %s14, 1
      %p88 = scmp.ne.s32.totalorder %s83, %s85
      %p89 = scmp.eq.s32.totalorder %s14, 0
      %p90 = por %p88, %p89
      %p91 = scmp.ne.s32.totalorder %s83, %s85
      %p92 = scmp.eq.s32.totalorder %s19, 1
      %p93 = por %p91, %p92
      %p94 = scmp.ne.s32.totalorder %s85, %s86
      %p95 = scmp.eq.s32.totalorder %s19, 0
      %p96 = por %p94, %p95
      %p97 = scmp.ne.s32.totalorder %s85, %s86
      %p98 = scmp.eq.s32.totalorder %s20, 1
      %p99 = por %p97, %p98
      %p101 = scmp.ne.s32.totalorder %s86, %s100
      %p102 = scmp.eq.s32.totalorder %s20, 0
      %p103 = por %p101, %p102
      %s104 = ssub.s32 %s21, %s33
      %p105 = scmp.eq.s32.totalorder %s104, 0
      %s107 = sadd.s32 %s106, 1
      %s108 = scalar_select %p105, %s106, %s107
      %p111 = pneg %p105
      %p112 = scmp.eq.s32.totalorder %s14, 1
      %p113 = por %p111, %p112
      %p114 = scmp.ne.s32.totalorder %s106, %s109
      %p115 = scmp.eq.s32.totalorder %s14, 0
      %p116 = por %p114, %p115
      %p117 = scmp.ne.s32.totalorder %s106, %s109
      %p118 = scmp.eq.s32.totalorder %s19, 1
      %p119 = por %p117, %p118
      %p120 = scmp.ne.s32.totalorder %s109, %s110
      %p121 = scmp.eq.s32.totalorder %s19, 0
      %p122 = por %p120, %p121
      %p123 = scmp.ne.s32.totalorder %s109, %s110
      %p124 = scmp.eq.s32.totalorder %s20, 1
      %p125 = por %p123, %p124
      %p127 = scmp.ne.s32.totalorder %s110, %s126
      %p128 = scmp.eq.s32.totalorder %s20, 0
      %p129 = por %p127, %p128
      %s130 = ssub.s32 %s21, %s33
      %s131 = ssub.s32 %s22, %s29
      %s132 = sor.u32 %s130, %s131
      %p133 = scmp.eq.s32.totalorder %s132, 0
      %s135 = sadd.s32 %s134, 1
      %s136 = scalar_select %p133, %s134, %s135
      %p139 = pneg %p133
      %p140 = scmp.eq.s32.totalorder %s14, 1
      %p141 = por %p139, %p140
      %p142 = scmp.ne.s32.totalorder %s134, %s137
      %p143 = scmp.eq.s32.totalorder %s14, 0
      %p144 = por %p142, %p143
      %p145 = scmp.ne.s32.totalorder %s134, %s137
      %p146 = scmp.eq.s32.totalorder %s19, 1
      %p147 = por %p145, %p146
      %p148 = scmp.ne.s32.totalorder %s137, %s138
      %p149 = scmp.eq.s32.totalorder %s19, 0
      %p150 = por %p148, %p149
      %p151 = scmp.ne.s32.totalorder %s137, %s138
      %p152 = scmp.eq.s32.totalorder %s20, 1
      %p153 = por %p151, %p152
      %p155 = scmp.ne.s32.totalorder %s138, %s154
      %p156 = scmp.eq.s32.totalorder %s20, 0
      %p157 = por %p155, %p156
      %p158 = scmp.le.s32.totalorder 1, %s14
      %p159 = scmp.lt.s32.totalorder %s14, 3
      %p160 = pnand %p158, %p159
      %p161 = pneg %p160
      // Predicated region
      $region9: #{tpu_custom_call.1} parent=5 // pred_check
        _
      $region10: #{tpu_custom_call.1} parent=5 // pred_check_branch
        %163 = sbr.rel (%p160) target = $region12
      $region11: #{tpu_custom_call.1} parent=5 // pred_region
        %s164 = ssub.s32 %s14, 1
        // Predicated region
        $region13: #{tpu_custom_call.1} parent=11 // pred_check
          %p165 = pneg %p75
        $region14: #{tpu_custom_call.1} parent=11 // pred_check_branch
          %167 = sbr.rel (%p165) target = $region16
        $region15: #{tpu_custom_call.1} parent=11 // pred_region
          _
        $region16: #{tpu_custom_call.1} parent=11 // pred_fallthru
          _
        // Predicated region
        $region17: #{tpu_custom_call.1} parent=11 // pred_check
          %p168 = pneg %p96
        $region18: #{tpu_custom_call.1} parent=11 // pred_check_branch
          %170 = sbr.rel (%p168) target = $region20
        $region19: #{tpu_custom_call.1} parent=11 // pred_region
          _
        $region20: #{tpu_custom_call.1} parent=11 // pred_fallthru
          _
      $region12: #{tpu_custom_call.1} parent=5 // pred_fallthru
        _
      %p171 = scmp.lt.s32.totalorder %s14, 2
      // Predicated region
      $region21: #{tpu_custom_call.1} parent=5 // pred_check
        %p172 = pneg %p171
      $region22: #{tpu_custom_call.1} parent=5 // pred_check_branch
        %174 = sbr.rel (%p172) target = $region24
      $region23: #{tpu_custom_call.1} parent=5 // pred_region
        // Predicated region
        $region25: #{tpu_custom_call.1} parent=23 // pred_check
          %p175 = pneg %p48
        $region26: #{tpu_custom_call.1} parent=23 // pred_check_branch
          %177 = sbr.rel (%p175) target = $region28
        $region27: #{tpu_custom_call.1} parent=23 // pred_region
          %p178 = scmp.lt.s32.totalorder %s21, 1
          %s179 = scalar_select %p178, %s21, 1
          %p180 = scmp.lt.s32.totalorder %s22, 0
          %s181 = scalar_select %p180, %s22, 0
          %s182 = sadd.s32 %s181, %s179
          %s183 = smul.addr %s182, 8
          %s184 = scalar_lea.vmem %s0, %s183
        $region28: #{tpu_custom_call.1} parent=23 // pred_fallthru
          _
      $region24: #{tpu_custom_call.1} parent=5 // pred_fallthru
        _
      %p185 = scmp.le.s32.totalorder 1, %s14
      %p186 = scmp.lt.s32.totalorder %s14, 3
      %p187 = pnand %p185, %p186
      %p188 = pneg %p187
      // Predicated region
      $region29: #{tpu_custom_call.1} parent=5 // pred_check
        _
      $region30: #{tpu_custom_call.1} parent=5 // pred_check_branch
        %190 = sbr.rel (%p187) target = $region32
      $region31: #{tpu_custom_call.1} parent=5 // pred_region
        %s191 = ssub.s32 %s14, 1
        %p192 = scmp.lt.s32.totalorder %s23, 1
        %s193 = scalar_select %p192, %s23, 1
        %p194 = scmp.lt.s32.totalorder %s24, 0
        %s195 = scalar_select %p194, %s24, 0
        %s196 = sadd.s32 %s195, %s193
        %s197 = smul.addr %s196, 8
        %s198 = scalar_lea.vmem %s0, %s197
        %p199 = pneg %p54
        %p200 = pneg %p51
        %p201 = pneg %p75
        %p202 = pneg %p72
        %p203 = pneg %p96
        %p204 = pneg %p93
        %p205 = pneg %p122
        %p206 = pneg %p119
        %p207 = scmp.lt.s32.totalorder %s23, 1
        %s208 = scalar_select %p207, %s23, 1
        %s209 = smul.addr %s208, 7
        %s210 = smul.addr %s209, 8
        %s211 = scalar_lea.vmem %s3, %s210
        %p212 = pneg %p150
        %p213 = pneg %p147
        %s214 = sand.u32 %s137, 1
        %s215 = scalar_lea.sflag [#allocation3], %s214
        %s216 = sand.u32 %s137, 1
        %s217 = smul.addr %s216, 8
        %s218 = scalar_lea.vmem [#allocation2], %s217
        %p219 = scmp.lt.s32.totalorder %s23, 1
        %s220 = scalar_select %p219, %s23, 1
        %p221 = scmp.lt.s32.totalorder %s24, 0
        %s222 = scalar_select %p221, %s24, 0
        %s223 = sadd.s32 %s222, %s220
        %s224 = smul.addr %s223, 8
        %s225 = scalar_lea.vmem %s0, %s224
        %p226 = scmp.lt.s32.totalorder %s23, 1
        %s227 = scalar_select %p226, %s23, 1
        %s228 = smul.addr %s227, 7
        %s229 = smul.addr %s228, 8
        %s230 = scalar_lea.vmem %s3, %s229
        %p231 = scmp.eq.s32.totalorder %s24, 0
        // Predicated region
        $region33: #{tpu_custom_call.1} parent=31 // pred_check
          %p232 = pneg %p231
        $region34: #{tpu_custom_call.1} parent=31 // pred_check_branch
          %234 = sbr.rel (%p232) target = $region36
        $region35: #{tpu_custom_call.1} parent=31 // pred_region
          %vm235 = vcmask 80896
          %236 = vst.msk [vmem:[%s230] sm:$0xff] %vm235, 0.0
          %237 = vst.msk [vmem:[%s230 + $0x8] sm:$0xff] %vm235, 0.0
          %238 = vst.msk [vmem:[%s230 + $0x10] sm:$0xff] %vm235, 0.0
          %239 = vst.msk [vmem:[%s230 + $0x18] sm:$0xff] %vm235, 0.0
          %240 = vst.msk [vmem:[%s230 + $0x20] sm:$0xff] %vm235, 0.0
          %241 = vst.msk [vmem:[%s230 + $0x28] sm:$0xff] %vm235, 0.0
          %vm242 = vcmask 74752
          %243 = vst.msk [vmem:[%s230 + $0x30] sm:$0x3] %vm242, 0.0
        $region36: #{tpu_custom_call.1} parent=31 // pred_fallthru
          _
        %v244 = vld [vmem:[%s225] sm:$0xff]
        %v245 = vld [vmem:[%s1] sm:$0xff]
        %v246 = vld [vmem:[%s1 + $0x8] sm:$0xff]
        %v247 = vld [vmem:[%s1 + $0x10] sm:$0xff]
        %v248 = vld [vmem:[%s1 + $0x18] sm:$0xff]
        %v249 = vld [vmem:[%s1 + $0x20] sm:$0xff]
        %v250 = vld [vmem:[%s1 + $0x28] sm:$0xff]
        %v251 = vld [vmem:[%s1 + $0x30] sm:$0xff]
        %v252 = vld [vmem:[%s1 + $0x38] sm:$0xff]
        %v253 = vld [vmem:[%s1 + $0x40] sm:$0xff]
        %v254 = vld [vmem:[%s1 + $0x48] sm:$0xff]
        %v255 = vld [vmem:[%s1 + $0x50] sm:$0xff]
        %v256 = vld [vmem:[%s1 + $0x58] sm:$0xff]
        %v257 = vld [vmem:[%s1 + $0x60] sm:$0xf]
        %v258 = vld [vmem:[%s2] sm:$0x1]
        %v260 = vlaneseq
        %v261 = vshrl.u32 %v260, 7
        %v262 = vsub.s32 0, %v261
        %v263 = vrot.slane %v258, %v262
        %vm265 = vcmask 818176
        %v267 = vsel %vm265, %v244, 0
        %vm269 = vcmask 1043456
        %v271 = vsel %vm269, %v257, 0
        %273 = vmatprep.subr.mxu0 0.0
        %274 = vmatpush1.msra.mxu0 %v245
        %275 = vmatprep.subr.mxu0 0.0
        %276 = vmatpush1.msra.mxu0 %v246
        %277 = vmatprep.subr.mxu0 0.0
        %278 = vmatpush1.msra.mxu0 %v247
        %279 = vmatprep.subr.mxu0 0.0
        %280 = vmatpush1.msra.mxu0 %v248
        %281 = vmatprep.subr.mxu0 0.0
        %282 = vmatpush1.msra.mxu0 %v249
        %283 = vmatprep.subr.mxu0 0.0
        %284 = vmatpush1.msra.mxu0 %v250
        %285 = vmatprep.subr.mxu0 0.0
        %286 = vmatpush1.msra.mxu0 %v251
        %287 = vmatprep.subr.mxu0 0.0
        %288 = vmatpush1.msra.mxu0 %v252
        %289 = vmatprep.subr.mxu0 0.0
        %290 = vmatpush1.msra.mxu0 %v253
        %291 = vmatprep.subr.mxu0 0.0
        %292 = vmatpush1.msra.mxu0 %v254
        %293 = vmatprep.subr.mxu0 0.0
        %294 = vmatpush1.msra.mxu0 %v255
        %295 = vmatprep.subr.mxu0 0.0
        %296 = vmatpush1.msra.mxu0 %v256
        %297 = vmatprep.subr.mxu0 0.0
        %298 = vmatpush1.msra.mxu0 %v271
        %299 = vmatprep.subr.mxu0 0.0
        %300 = vmatpush1.msra.mxu0 0.0
        %301 = vmatprep.subr.mxu0 0.0
        %302 = vmatpush1.msra.mxu0 0.0
        %303 = vmatprep.subr.mxu0 0.0
        %304 = vmatpush1.msra.mxu0 0.0
        %305 = vmatprep.subr.mxu0 0.0
        %306 = vmatpush1.msra.mxu0 0.0
        %307 = vmatprep.subr.mxu0 0.0
        %308 = vmatpush1.msra.mxu0 0.0
        %309 = vmatprep.subr.mxu0 0.0
        %310 = vmatpush1.msra.mxu0 0.0
        %311 = vmatprep.subr.mxu0 0.0
        %312 = vmatpush1.msra.mxu0 0.0
        %313 = vmatprep.subr.mxu0 0.0
        %314 = vmatpush1.msra.mxu0 0.0
        %315 = vmatprep.subr.mxu0 0.0
        %316 = vmatpush1.msra.mxu0 0.0
        %317 = vmatprep.subr.mxu0 0.0
        %318 = vmatpush1.msra.mxu0 0.0
        %319 = vmatprep.subr.mxu0 0.0
        %320 = vmatpush1.msra.mxu0 0.0
        %321 = vmatprep.subr.mxu0 0.0
        %322 = vmatpush1.msra.mxu0 0.0
        %323 = vmatprep.subr.mxu0 0.0
        %324 = vmatpush1.msra.mxu0 0.0
        %325 = vmatprep.subr.mxu0 0.0
        %326 = vmatpush1.msra.mxu0 0.0
        %327 = vmatprep.subr.mxu0 0.0
        %328 = vmatpush1.msra.mxu0 0.0
        %329 = vmatprep.subr.mxu0 0.0
        %330 = vmatpush1.msra.mxu0 0.0
        %331 = vmatprep.subr.mxu0 0.0
        %332 = vmatpush1.msra.mxu0 0.0
        %333 = vmatprep.subr.mxu0 0.0
        %334 = vmatpush1.msra.mxu0 0.0
        %335 = vmatprep.subr.mxu0 0.0
        %336 = vmatpush1.msra.mxu0 0.0
        %337 = vmatprep.mubr.f32.mxu0 0.0
        %338 = vmatmul.mubr.f32.gmra.mrb[0].mxu0 %v267
        %v339 = vpop.f32.mrb[0].mxu0
        %v340 = vadd.f32 %v263, %v339
        %v341 = vpop.f32.mrb[0].mxu0
        %342 = vdwg.mxu0
        %v343 = vsub.f32 %v340, 2.9957323
        %v344 = vmul.f32 %v343, 0.5
        %v345 = vtanh.pop %v344
        %v346 = vmul.f32 %v345, 0.5
        %v347 = vadd.f32 %v346, 0.5
        %349 = vrot.lane.b32.xlu0 %v347, 78
        %v350 = vpop.permute.xlu0 %349
        %vm352 = vcmask 80896
        %353 = vst.msk [vmem:[%s218] sm:$0xff] %vm352, %v350
        %v354 = vld [vmem:[%s230] sm:$0xff]
        %v355 = vld [vmem:[%s230 + $0x8] sm:$0xff]
        %v356 = vld [vmem:[%s230 + $0x10] sm:$0xff]
        %v357 = vld [vmem:[%s230 + $0x18] sm:$0xff]
        %v358 = vld [vmem:[%s230 + $0x20] sm:$0xff]
        %v359 = vld [vmem:[%s230 + $0x28] sm:$0xff]
        %v360 = vld [vmem:[%s230 + $0x30] sm:$0x3]
        %361 = vxpose.xlu0.b32.start [1/16] %v340, 128
        %362 = vxpose.xlu0.b32.cont [2/16] 0.0, 128
        %363 = vxpose.xlu0.b32.cont [3/16] 0.0, 128
        %364 = vxpose.xlu0.b32.cont [4/16] 0.0, 128
        %365 = vxpose.xlu0.b32.cont [5/16] 0.0, 128
        %366 = vxpose.xlu0.b32.cont [6/16] 0.0, 128
        %367 = vxpose.xlu0.b32.cont [7/16] 0.0, 128
        %368 = vxpose.xlu0.b32.cont [8/16] 0.0, 128
        %369 = vxpose.xlu0.b32.cont [9/16] 0.0, 128
        %370 = vxpose.xlu0.b32.cont [10/16] 0.0, 128
        %371 = vxpose.xlu0.b32.cont [11/16] 0.0, 128
        %372 = vxpose.xlu0.b32.cont [12/16] 0.0, 128
        %373 = vxpose.xlu0.b32.cont [13/16] 0.0, 128
        %374 = vxpose.xlu0.b32.cont [14/16] 0.0, 128
        %375 = vxpose.xlu0.b32.cont [15/16] 0.0, 128
        %376 = vxpose.xlu0.b32.end [16/16] 0.0, 128
        %v377 = vpop.trf.xlu0
        %v378 = vpop.trf.xlu0
        %v379 = vpop.trf.xlu0
        %v380 = vpop.trf.xlu0
        %v381 = vpop.trf.xlu0
        %v382 = vpop.trf.xlu0
        %v383 = vpop.trf.xlu0
        %v384 = vpop.trf.xlu0
        %v385 = vpop.trf.xlu0
        %v386 = vpop.trf.xlu0
        %v387 = vpop.trf.xlu0
        %v388 = vpop.trf.xlu0
        %v389 = vpop.trf.xlu0
        %v390 = vpop.trf.xlu0
        %v391 = vpop.trf.xlu0
        %v392 = vpop.trf.xlu0
        %vm393 = vcmask 64512
        %v395 = vsel %vm393, %v377, 0
        %v398 = vsel %vm393, %v378, 0
        %v401 = vsel %vm393, %v379, 0
        %v404 = vsel %vm393, %v380, 0
        %v407 = vsel %vm393, %v381, 0
        %v410 = vsel %vm393, %v382, 0
        %v413 = vsel %vm393, %v383, 0
        %415 = vmatprep.subr.mxu0 0.0
        %416 = vmatpush1.msra.mxu0 %v350
        %417 = vmatprep.subr.mxu0 0.0
        %418 = vmatpush1.msra.mxu0 0.0
        %419 = vmatprep.subr.mxu0 0.0
        %420 = vmatpush1.msra.mxu0 0.0
        %421 = vmatprep.subr.mxu0 0.0
        %422 = vmatpush1.msra.mxu0 0.0
        %423 = vmatprep.subr.mxu0 0.0
        %424 = vmatpush1.msra.mxu0 0.0
        %425 = vmatprep.subr.mxu0 0.0
        %426 = vmatpush1.msra.mxu0 0.0
        %427 = vmatprep.subr.mxu0 0.0
        %428 = vmatpush1.msra.mxu0 0.0
        %429 = vmatprep.subr.mxu0 0.0
        %430 = vmatpush1.msra.mxu0 0.0
        %431 = vmatprep.subr.mxu0 0.0
        %432 = vmatpush1.msra.mxu0 0.0
        %433 = vmatprep.subr.mxu0 0.0
        %434 = vmatpush1.msra.mxu0 0.0
        %435 = vmatprep.subr.mxu0 0.0
        %436 = vmatpush1.msra.mxu0 0.0
        %437 = vmatprep.subr.mxu0 0.0
        %438 = vmatpush1.msra.mxu0 0.0
        %439 = vmatprep.subr.mxu0 0.0
        %440 = vmatpush1.msra.mxu0 0.0
        %441 = vmatprep.subr.mxu0 0.0
        %442 = vmatpush1.msra.mxu0 0.0
        %443 = vmatprep.subr.mxu0 0.0
        %444 = vmatpush1.msra.mxu0 0.0
        %445 = vmatprep.subr.mxu0 0.0
        %446 = vmatpush1.msra.mxu0 0.0
        %447 = vmatprep.subr.mxu0 0.0
        %448 = vmatpush1.msra.mxu0 0.0
        %449 = vmatprep.subr.mxu0 0.0
        %450 = vmatpush1.msra.mxu0 0.0
        %451 = vmatprep.subr.mxu0 0.0
        %452 = vmatpush1.msra.mxu0 0.0
        %453 = vmatprep.subr.mxu0 0.0
        %454 = vmatpush1.msra.mxu0 0.0
        %455 = vmatprep.subr.mxu0 0.0
        %456 = vmatpush1.msra.mxu0 0.0
        %457 = vmatprep.subr.mxu0 0.0
        %458 = vmatpush1.msra.mxu0 0.0
        %459 = vmatprep.subr.mxu0 0.0
        %460 = vmatpush1.msra.mxu0 0.0
        %461 = vmatprep.subr.mxu0 0.0
        %462 = vmatpush1.msra.mxu0 0.0
        %463 = vmatprep.subr.mxu0 0.0
        %464 = vmatpush1.msra.mxu0 0.0
        %465 = vmatprep.subr.mxu0 0.0
        %466 = vmatpush1.msra.mxu0 0.0
        %467 = vmatprep.subr.mxu0 0.0
        %468 = vmatpush1.msra.mxu0 0.0
        %469 = vmatprep.subr.mxu0 0.0
        %470 = vmatpush1.msra.mxu0 0.0
        %471 = vmatprep.subr.mxu0 0.0
        %472 = vmatpush1.msra.mxu0 0.0
        %473 = vmatprep.subr.mxu0 0.0
        %474 = vmatpush1.msra.mxu0 0.0
        %475 = vmatprep.subr.mxu0 0.0
        %476 = vmatpush1.msra.mxu0 0.0
        %477 = vmatprep.subr.mxu0 0.0
        %478 = vmatpush1.msra.mxu0 0.0
        %479 = vmatprep.mubr.f32.mxu0 0.0
        %480 = vmatmul.mubr.f32.gmra.mrb[0].mxu0 %v395
        %v481 = vpop.f32.mrb[0].mxu0
        %v482 = vadd.f32 0.0, %v481
        %v483 = vpop.f32.mrb[0].mxu0
        %484 = vmatprep.mubr.f32.mxu0 0.0
        %485 = vmatmul.mubr.f32.gmra.mrb[0].mxu0 %v398
        %v486 = vpop.f32.mrb[0].mxu0
        %v487 = vadd.f32 0.0, %v486
        %v488 = vpop.f32.mrb[0].mxu0
        %489 = vmatprep.mubr.f32.mxu0 0.0
        %490 = vmatmul.mubr.f32.gmra.mrb[0].mxu0 %v401
        %v491 = vpop.f32.mrb[0].mxu0
        %v492 = vadd.f32 0.0, %v491
        %v493 = vpop.f32.mrb[0].mxu0
        %494 = vmatprep.mubr.f32.mxu0 0.0
        %495 = vmatmul.mubr.f32.gmra.mrb[0].mxu0 %v404
        %v496 = vpop.f32.mrb[0].mxu0
        %v497 = vadd.f32 0.0, %v496
        %v498 = vpop.f32.mrb[0].mxu0
        %499 = vmatprep.mubr.f32.mxu0 0.0
        %500 = vmatmul.mubr.f32.gmra.mrb[0].mxu0 %v407
        %v501 = vpop.f32.mrb[0].mxu0
        %v502 = vadd.f32 0.0, %v501
        %v503 = vpop.f32.mrb[0].mxu0
        %504 = vmatprep.mubr.f32.mxu0 0.0
        %505 = vmatmul.mubr.f32.gmra.mrb[0].mxu0 %v410
        %v506 = vpop.f32.mrb[0].mxu0
        %v507 = vadd.f32 0.0, %v506
        %v508 = vpop.f32.mrb[0].mxu0
        %509 = vmatprep.mubr.f32.mxu0 0.0
        %510 = vmatmul.mubr.f32.gmra.mrb[0].mxu0 %v413
        %v511 = vpop.f32.mrb[0].mxu0
        %v512 = vadd.f32 0.0, %v511
        %v513 = vpop.f32.mrb[0].mxu0
        %514 = vdwg.mxu0
        %v515 = vadd.f32 %v354, %v482
        %v516 = vadd.f32 %v355, %v487
        %v517 = vadd.f32 %v356, %v492
        %v518 = vadd.f32 %v357, %v497
        %v519 = vadd.f32 %v358, %v502
        %v520 = vadd.f32 %v359, %v507
        %v521 = vadd.f32 %v360, %v512
        %522 = vst.msk [vmem:[%s230] sm:$0xff] %vm352, %v515
        %523 = vst.msk [vmem:[%s230 + $0x8] sm:$0xff] %vm352, %v516
        %524 = vst.msk [vmem:[%s230 + $0x10] sm:$0xff] %vm352, %v517
        %525 = vst.msk [vmem:[%s230 + $0x18] sm:$0xff] %vm352, %v518
        %526 = vst.msk [vmem:[%s230 + $0x20] sm:$0xff] %vm352, %v519
        %527 = vst.msk [vmem:[%s230 + $0x28] sm:$0xff] %vm352, %v520
        %vm528 = vcmask 74752
        %529 = vst.msk [vmem:[%s230 + $0x30] sm:$0x3] %vm528, %v521
        %p530 = scmp.lt.s32.totalorder %s23, 1
        %s531 = scalar_select %p530, %s23, 1
        %s532 = smul.addr %s531, 7
        %s533 = smul.addr %s532, 8
        %s534 = scalar_lea.vmem %s3, %s533
        %s535 = sand.u32 %s137, 1
        %s536 = scalar_lea.sflag [#allocation3], %s535
        %s537 = sand.u32 %s137, 1
        %s538 = smul.addr %s537, 8
        %s539 = scalar_lea.vmem [#allocation2], %s538
        // Predicated region
        $region37: #{tpu_custom_call.1} parent=31 // pred_check
          %p540 = pneg %p119
        $region38: #{tpu_custom_call.1} parent=31 // pred_check_branch
          %542 = sbr.rel (%p540) target = $region40
        $region39: #{tpu_custom_call.1} parent=31 // pred_region
          _
        $region40: #{tpu_custom_call.1} parent=31 // pred_fallthru
          _
        // Predicated region
        $region41: #{tpu_custom_call.1} parent=31 // pred_check
          %p543 = pneg %p147
        $region42: #{tpu_custom_call.1} parent=31 // pred_check_branch
          %545 = sbr.rel (%p543) target = $region44
        $region43: #{tpu_custom_call.1} parent=31 // pred_region
          %s547 = ssub.s32 128, 128
          %548 = vsyncadd %s536, %s547
          %s549 = sadd.s32 %s24, %s23
          %s550 = smul.addr %s549, 128
          %s551 = scalar_lea.hbm %s4, %s550
          %s553 = sshll.u32 %s539, 4
          %s554 = int_to_ptr.vmem [resolvable:$true] %s553
          %556 = dma.vmem_to_hbm [thread:$0]  %s554, 128, %s551, %s536
        $region44: #{tpu_custom_call.1} parent=31 // pred_fallthru
          _
      $region32: #{tpu_custom_call.1} parent=5 // pred_fallthru
        _
      %p557 = scmp.le.s32.totalorder 2, %s14
      // Predicated region
      $region45: #{tpu_custom_call.1} parent=5 // pred_check
        %p558 = pneg %p557
      $region46: #{tpu_custom_call.1} parent=5 // pred_check_branch
        %560 = sbr.rel (%p558) target = $region48
      $region47: #{tpu_custom_call.1} parent=5 // pred_region
        %s561 = ssub.s32 %s14, 2
        // Predicated region
        $region49: #{tpu_custom_call.1} parent=47 // pred_check
          %p562 = pneg %p125
        $region50: #{tpu_custom_call.1} parent=47 // pred_check_branch
          %564 = sbr.rel (%p562) target = $region52
        $region51: #{tpu_custom_call.1} parent=47 // pred_region
          %p565 = scmp.lt.s32.totalorder %s25, 1
          %s566 = scalar_select %p565, %s25, 1
          %s567 = smul.addr %s566, 7
          %s568 = smul.addr %s567, 8
          %s569 = scalar_lea.vmem %s3, %s568
        $region52: #{tpu_custom_call.1} parent=47 // pred_fallthru
          _
        // Predicated region
        $region53: #{tpu_custom_call.1} parent=47 // pred_check
          %p570 = pneg %p153
        $region54: #{tpu_custom_call.1} parent=47 // pred_check_branch
          %572 = sbr.rel (%p570) target = $region56
        $region55: #{tpu_custom_call.1} parent=47 // pred_region
          %s573 = sand.u32 %s138, 1
          %s574 = scalar_lea.sflag [#allocation3], %s573
          %s575 = sand.u32 %s138, 1
          %s576 = smul.addr %s575, 8
          %s577 = scalar_lea.vmem [#allocation2], %s576
          %578 = dma.done %s574, 128
        $region56: #{tpu_custom_call.1} parent=47 // pred_fallthru
          _
      $region48: #{tpu_custom_call.1} parent=5 // pred_fallthru
        _
    $region6: #{tpu_custom_call.1} parent=1 // loop_footer
      %s18 = sadd.s32 1, %s14
    $region7: #{tpu_custom_call.1} parent=1 // loop_footer_branch
      %13 = sbr.rel target = $region3
    $region8: #{tpu_custom_call.1} parent=1 // loop_exit
      _
    %579 = vsyncpa [#allocation3], 1
    %s580 = scalar_lea.sflag [#allocation3], 1
    %581 = vsyncpa %s580, 1

</llo_original>
